<compile_context>
chip_gen: v7x
topology: tpu7x:2x2x1
jax: 0.10.0
libtpu: 0.0.40
codegen_flags: <defaults>
</compile_context>

<pallas_src>
import math
import functools

import jax
import jax.numpy as jnp
from jax.experimental import pallas as pl
from jax.experimental.pallas import tpu as pltpu


def _sinusoidal_kernel(x_ref, out_ref, *, scale, half_dim, emb_scale, split_store):
    # x_ref:   (TB, 1)   float32 timesteps
    # out_ref: (TB, dim) out dtype, [sin(z) | cos(z)]
    x = x_ref[...]                                                  # (TB, 1)

    if split_store:
        # half_dim % 128 == 0: evaluate sin/cos once each over half width and
        # do two lane-aligned (unmasked) stores.
        lane = jax.lax.broadcasted_iota(jnp.int32, (1, half_dim), 1)
        freq = jnp.exp(lane.astype(jnp.float32) * (-emb_scale))    # (1, half_dim) EUP
        z = (scale * x) * freq                                     # torch rounding order
        out_ref[:, :half_dim] = jnp.sin(z).astype(out_ref.dtype)
        out_ref[:, half_dim:] = jnp.cos(z).astype(out_ref.dtype)
    else:
        # General path: duplicated in-kernel freq row [f | f] + per-lane select,
        # single lane-dense full-width store.
        dim = out_ref.shape[-1]
        lane = jax.lax.broadcasted_iota(jnp.int32, (1, dim), 1)
        idx = jnp.where(lane < half_dim, lane, lane - half_dim).astype(jnp.float32)
        freq = jnp.exp(idx * (-emb_scale))                         # (1, dim) EUP
        z = (scale * x) * freq                                     # (TB, dim)
        out = jnp.where(lane < half_dim, jnp.sin(z), jnp.cos(z))   # VPU select
        out_ref[...] = out.astype(out_ref.dtype)                   # single store


def sinusoidal_pos_emb(x, dim, scale=1000.0, out_dtype=jnp.float32,
                       max_tile_bytes=2 * 1024 * 1024, multi_core=False):
    """Equivalent of SinusoidalPosEmb(dim).forward(x, scale).

    out_dtype=jnp.bfloat16 halves HBM write bytes (biggest lever on v5e);
    compute stays f32 and the cast happens at the store.
    multi_core=True requests a CORE_PARALLEL split of the batch grid across
    TensorCores (v7x) when the grid has >= 2 tiles.
    """
    assert dim % 2 == 0, "SinusoidalPosEmb requires dim to be even"
    assert dim >= 4, "dim == 2 divides by zero in the freq scale (same as torch)"

    x = jnp.asarray(x, dtype=jnp.float32)
    if x.ndim < 1:
        x = x[None]                                  # matches x.unsqueeze(0)
    assert x.ndim == 1, "expected a 1-D vector of timesteps"

    half_dim = dim // 2
    emb_scale = math.log(10000.0) / (half_dim - 1)

    B = x.shape[0]
    x2d = x.reshape(B, 1)

    # Batch tile: 8-row aligned, sized from a ~2 MiB output budget.  Double
    # buffered that is ~4 MiB, comfortably under v5e's 16 MiB scoped-VMEM
    # default and v7x's 32 MiB.
    out_itemsize = jnp.dtype(out_dtype).itemsize
    rows_budget = max(8, ((int(max_tile_bytes) // (dim * out_itemsize)) // 8) * 8)
    tb = B if B <= rows_budget else rows_budget
    grid = (pl.cdiv(B, tb),)

    split_store = (half_dim % 128 == 0)

    kernel = functools.partial(
        _sinusoidal_kernel,
        scale=float(scale),
        half_dim=half_dim,
        emb_scale=float(emb_scale),
        split_store=split_store,
    )

    if multi_core and grid[0] >= 2:
        # v7x: split the batch grid across the two TensorCores.
        dim_semantics = (pltpu.CORE_PARALLEL,)
    else:
        dim_semantics = ("arbitrary",)

    out = pl.pallas_call(
        kernel,
        out_shape=jax.ShapeDtypeStruct((B, dim), out_dtype),
        grid=grid,
        in_specs=[pl.BlockSpec((tb, 1), lambda i: (i, 0))],      # timesteps, tiled over B
        out_specs=pl.BlockSpec((tb, dim), lambda i: (i, 0)),
        compiler_params=pltpu.CompilerParams(dimension_semantics=dim_semantics),
    )(x2d)
    return out


def _reference(x, dim, scale=1000.0):
    x = jnp.asarray(x, dtype=jnp.float32)
    if x.ndim < 1:
        x = x[None]
    half_dim = dim // 2
    e = math.log(10000.0) / (half_dim - 1)
    freqs = jnp.exp(jnp.arange(half_dim, dtype=jnp.float32) * -e)
    emb = (scale * x[:, None]) * freqs[None, :]
    return jnp.concatenate([jnp.sin(emb), jnp.cos(emb)], axis=-1)


if __name__ == "__main__":
    key = jax.random.PRNGKey(0)

    # 1) Small shape: typical flow-matching timestep embedding.
    B, DIM = 8, 32
    x = jax.random.uniform(key, (B,), dtype=jnp.float32)
    out = jax.block_until_ready(sinusoidal_pos_emb(x, DIM, scale=1000.0))
    ref = _reference(x, DIM, scale=1000.0)
    assert out.shape == (B, DIM)
    assert out.dtype == jnp.float32
    # In-kernel exp/sin/cos vs XLA's can differ by a few ULPs, amplified by
    # arguments up to ~scale -> allow ~1e-3 absolute on values in [-1, 1].
    assert jnp.allclose(out, ref, atol=1e-3, rtol=1e-5)

    # 2) dim >= 256 fast path (two lane-aligned half stores).
    B2, DIM2 = 64, 256
    x2 = jax.random.uniform(jax.random.PRNGKey(1), (B2,), dtype=jnp.float32)
    out2 = jax.block_until_ready(sinusoidal_pos_emb(x2, DIM2, scale=1000.0))
    ref2 = _reference(x2, DIM2, scale=1000.0)
    assert out2.shape == (B2, DIM2)
    assert jnp.allclose(out2, ref2, atol=1e-3, rtol=1e-5)

    # 3) Multi-tile batch grid (force a tiny tile budget -> 8-row tiles).
    B3, DIM3 = 60, 32   # B3 % 8 != 0 also exercises the padded last tile
    x3 = jax.random.uniform(jax.random.PRNGKey(2), (B3,), dtype=jnp.float32)
    out3 = jax.block_until_ready(
        sinusoidal_pos_emb(x3, DIM3, scale=1000.0, max_tile_bytes=8 * DIM3 * 4))
    ref3 = _reference(x3, DIM3, scale=1000.0)
    assert out3.shape == (B3, DIM3)
    assert jnp.allclose(out3, ref3, atol=1e-3, rtol=1e-5)

    # 4) bf16 output (halves HBM write bytes; compute stays f32).
    out_bf16 = jax.block_until_ready(
        sinusoidal_pos_emb(x, DIM, scale=1000.0, out_dtype=jnp.bfloat16))
    assert out_bf16.dtype == jnp.bfloat16
    assert jnp.allclose(out_bf16.astype(jnp.float32), ref, atol=1e-2, rtol=1e-2)

    # 5) 0-d input (matches torch's x.unsqueeze(0) behavior).
    x0 = jnp.float32(0.37)
    out0 = jax.block_until_ready(sinusoidal_pos_emb(x0, DIM, scale=1000.0))
    ref0 = _reference(x0, DIM, scale=1000.0)
    assert out0.shape == (1, DIM)
    assert jnp.allclose(out0, ref0, atol=1e-3, rtol=1e-5)

    print("KERNEL_OK")
</pallas_src>

<mosaic_0001>
module attributes {stable_mosaic.version = 11 : i64} {
  func.func @_sinusoidal_kernel(%arg0: i32, %arg1: memref<8x1xf32, #tpu.memory_space<vmem>>, %arg2: memref<8x32xf32, #tpu.memory_space<vmem>>) attributes {dimension_semantics = [#tpu.dimension_semantics<arbitrary>], iteration_bounds = array<i64: 1>, scalar_prefetch = 0 : i64, scratch_operands = 0 : i64, tpu.core_type = #tpu.core_type<tc>, window_params = [{transform_indices = @transform_0, window_bounds = array<i64: 8, 1>}, {transform_indices = @transform_1, window_bounds = array<i64: 8, 32>}]} {
    %c0 = arith.constant 0 : index
    %c0_0 = arith.constant 0 : index
    %0 = vector.load %arg1[%c0, %c0_0] : memref<8x1xf32, #tpu.memory_space<vmem>>, vector<8x1xf32>
    %1 = tpu.iota {dimensions = array<i32: 1>} : vector<1x32xi32>
    %c16_i32 = arith.constant 16 : i32
    %2 = vector.broadcast %c16_i32 : i32 to vector<1x32xi32>
    %3 = arith.cmpi slt, %1, %2 : vector<1x32xi32>
    %c16_i32_1 = arith.constant 16 : i32
    %4 = vector.broadcast %c16_i32_1 : i32 to vector<1x32xi32>
    %5 = arith.subi %1, %4 : vector<1x32xi32>
    %6 = arith.select %3, %1, %5 : vector<1x32xi1>, vector<1x32xi32>
    %7 = arith.sitofp %6 : vector<1x32xi32> to vector<1x32xf32>
    %cst = arith.constant -0.614022672 : f32
    %8 = vector.broadcast %cst : f32 to vector<1x32xf32>
    %9 = arith.mulf %7, %8 : vector<1x32xf32>
    %10 = math.exp %9 : vector<1x32xf32>
    %cst_2 = arith.constant 1.000000e+03 : f32
    %11 = vector.broadcast %cst_2 : f32 to vector<8x1xf32>
    %12 = arith.mulf %11, %0 : vector<8x1xf32>
    %13 = vector.broadcast %12 : vector<8x1xf32> to vector<8x32xf32>
    %14 = vector.broadcast %10 : vector<1x32xf32> to vector<8x32xf32>
    %15 = arith.mulf %13, %14 : vector<8x32xf32>
    %c16_i32_3 = arith.constant 16 : i32
    %16 = vector.broadcast %c16_i32_3 : i32 to vector<1x32xi32>
    %17 = arith.cmpi slt, %1, %16 : vector<1x32xi32>
    %18 = math.sin %15 : vector<8x32xf32>
    %19 = math.cos %15 : vector<8x32xf32>
    %20 = vector.shape_cast %17 : vector<1x32xi1> to vector<1x32xi1>
    %21 = vector.broadcast %20 : vector<1x32xi1> to vector<8x32xi1>
    %22 = arith.select %21, %18, %19 : vector<8x32xi1>, vector<8x32xf32>
    %c0_4 = arith.constant 0 : index
    %c0_5 = arith.constant 0 : index
    %23 = vector.load %arg2[%c0_4, %c0_5] : memref<8x32xf32, #tpu.memory_space<vmem>>, vector<8x32xf32>
    tpu.vector_store %arg2[%c0_4, %c0_5], %22 {strides = array<i32>} : memref<8x32xf32, #tpu.memory_space<vmem>>, vector<8x32xf32>,
    return
  }
  func.func @transform_0(%arg0: i32) -> (i32, i32) {
    %c0_i32 = arith.constant 0 : i32
    %c0_i32_0 = arith.constant 0 : i32
    return %arg0, %c0_i32 : i32, i32
  }
  func.func @transform_1(%arg0: i32) -> (i32, i32) {
    %c0_i32 = arith.constant 0 : i32
    %c0_i32_0 = arith.constant 0 : i32
    return %arg0, %c0_i32 : i32, i32
  }
}

</mosaic_0001>

<llo_original>
// kernel: tpu_custom_call.1
$region0: #{tpu_custom_call.1}
  #allocation0 [shape = 'u32[]', space=smem, size = 0x4, offset = 0x4, fixed_abs, tag = 'smem constant byte address 0x4 - core index']
  #allocation1 [shape = 'u32[144,128]{1,0:T(1,128)}', space=vmem, size = 0x12000, scoped, tag = 'internal scratch']
  %s0 = inlined_call_operand.vmem [shape: f32[8,1], index: 0, kind: input, shape index: {}]
  %s1 = inlined_call_operand.hbm [shape: f32[8,32], index: 1, kind: output, shape index: {}]
  %s2 = sld [smem:[#allocation0]]
  $region14: #{tpu_custom_call.1} parent=0
    _
  %s4 = ssub.s32 1, %s2
  %s5 = scalar_select 0, %s4, %s2
  $region1: #{tpu_custom_call.1} parent=0
    #allocation2 [shape = 'u8[4096]{0}', space=vmem, size = 0x1000, scoped, tag = 'output window, operand 0, single buffered']
    #allocation3 [shape = 's32[1]{0}', space=sflag, size = 0x4, scoped, tag = 'scoped memory for tpu_custom_call.1']
    %6 = vsyncpa [#allocation3], 0
    // Predicated region
    $region2: #{tpu_custom_call.1} parent=1 // pred_check
      _
    $region3: #{tpu_custom_call.1} parent=1 // pred_check_branch
      %8 = sbr.rel (0) target = $region5
    $region4: #{tpu_custom_call.1} parent=1 // pred_region
      _
    $region5: #{tpu_custom_call.1} parent=1 // pred_fallthru
      _
    %v9 = vld [vmem:[%s0] sm:$0xff]
    %v10 = vlaneseq
    %v11 = vand.u32 %v10, 127
    %vm12 = vcmp.lt.s32.totalorder %v11, 16
    %v13 = vsub.s32 %v11, 16
    %v14 = vsel %vm12, %v11, %v13
    %v15 = vcvt.s32.f32 %v14
    %v16 = vmul.f32 %v15, -0.6140227
    %v17 = vmul.f32 %v16, 1.442695
    %v18 = vpow.pop %v17
    %v19 = vmul.f32 %v9, 1000.0
    %21 = vset.pattern.permute.xlu0 0
    %22 = vperm.xlu0 %21, %v19
    %v23 = vpop.permute.xlu0 %22
    %v25 = vmul.f32 %v23, %v18
    %v26 = vand.u32 2147483647, %v25
    %vm27 = vcmp.le.f32.partialorder %v26, 0.7853982
    %vm28 = vcmp.lt.s32.totalorder %v25, 0
    %v29 = vand.u32 %v25, 2139095040
    %v30 = vshrl.u32 %v29, 23
    %v31 = vsub.s32 %v30, 127
    %v32 = vand.u32 2147483647, %v25
    %v33 = vand.u32 %v32, 8388607
    %v34 = vor.u32 %v33, 8388608
    %v35 = vsub.s32 0, %v34
    %v36 = vadd.s32 %v31, 1
    %vm37 = vcmp.gt.s32.totalorder %v36, 0
    %v38 = vsel %vm37, %v36, 0
    %v39 = vshrl.u32 %v38, 5
    %v40 = vand.u32 %v38, 31
    %v41 = vsub.s32 32, %v40
    %v42 = vshrl.u32 683565275, %v41
    %v43 = vshll.u32 683565275, %v40
    %v44 = vshrl.u32 2475754826, %v41
    %v45 = vor.u32 %v43, %v44
    %v46 = vshll.u32 2475754826, %v40
    %v47 = vshrl.u32 2131351028, %v41
    %v48 = vor.u32 %v46, %v47
    %v49 = vshll.u32 2131351028, %v40
    %v50 = vshrl.u32 2102212464, %v41
    %v51 = vor.u32 %v49, %v50
    %v52 = vshll.u32 2102212464, %v40
    %v53 = vshrl.u32 920167782, %v41
    %v54 = vor.u32 %v52, %v53
    %v55 = vshll.u32 920167782, %v40
    %v56 = vshrl.u32 1326507024, %v41
    %v57 = vor.u32 %v55, %v56
    %vm58 = vcmp.lt.s32.totalorder %v39, 1
    %vm59 = vcmp.lt.s32.totalorder %v39, 2
    %vm60 = vcmp.lt.s32.totalorder %v39, 3
    %vm61 = vcmp.lt.s32.totalorder %v39, 4
    %v62 = vsel %vm58, %v42, %v45
    %v63 = vsel %vm61, %v51, 2102212464
    %v64 = vsel %vm60, %v48, %v63
    %v65 = vsel %vm59, %v62, %v64
    %v66 = vsel %vm58, %v45, %v48
    %v67 = vsel %vm61, %v54, 920167782
    %v68 = vsel %vm60, %v51, %v67
    %v69 = vsel %vm59, %v66, %v68
    %v70 = vsel %vm58, %v48, %v51
    %v71 = vsel %vm61, %v57, 1326507024
    %v72 = vsel %vm60, %v54, %v71
    %v73 = vsel %vm59, %v70, %v72
    %v74 = vshll.u32 %v34, 8
    %v75 = vmul.u32.u64.compose %v74, %v73
    %v76 = vextract.low.u32 %v75
    %v77 = vextract.high.u32 %v75
    %v78 = vmul.u32.u64.compose %v74, %v69
    %v79 = vextract.low.u32 %v78
    %v80 = vextract.high.u32 %v78
    %v81 = vmul.u32 %v74, %v65
    %v82 = vadd.s32 %v77, %v79
    %vm83 = vc.u32 %v77, %v79
    %v84 = vadd.s32 %v80, 1
    %v85 = vsel %vm83, %v84, %v80
    %v86 = vadd.s32 %v81, %v85
    %v87 = vadd.s32 %v86, 536870912
    %v88 = vshrl.u32 %v87, 30
    %v89 = vshll.u32 %v88, 30
    %v90 = vsub.s32 %v86, %v89
    %vm91 = vcmp.lt.s32.totalorder %v90, 0
    %v92 = vsub.s32 0, %v90
    %v93 = vsel %vm91, %v92, %v90
    %v94 = vclz %v93
    %v95 = vsub.s32 %v94, 2
    %vm96 = vcmp.gt.s32.totalorder 0, %v95
    %v97 = vsel %vm96, 0, %v95
    %v98 = vsub.s32 32, %v97
    %v99 = vshll.u32 %v90, %v97
    %v100 = vshrl.u32 %v82, %v98
    %v101 = vor.u32 %v99, %v100
    %v102 = vsub.s32 4294967266, %v97
    %v103 = vadd.s32 %v102, 127
    %v104 = vshll.u32 %v103, 23
    %v105 = vor.u32 4788187, %v104
    %v106 = vand.u32 2147483647, %v105
    %v108 = vcvt.s32.f32 %v101
    %v109 = vmul.f32 %v108, %v106
    %v110 = vxor.u32 %v109, 2147483648
    %v111 = vsel %vm28, %v110, %v109
    %v112 = vsub.s32 4, %v88
    %v113 = vsel %vm28, %v112, %v88
    %v114 = vsel %vm27, %v25, %v111
    %v115 = vsel %vm27, 0, %v113
    %v116 = vcosq.f32.pop %v114
    %v117 = vsinq.f32.pop %v114
    %vm118 = vweird.f32 %v25
    %v119 = vadd.s32 %v115, 3
    %v120 = vand.u32 %v119, 3
    %vm121 = vcmp.lt.s32.totalorder %v120, 2
    %vm122 = vcmp.eq.s32.totalorder %v120, 0
    %v123 = vxor.u32 %v117, 2147483648
    %v124 = vsel %vm122, %v116, %v123
    %vm125 = vcmp.eq.s32.totalorder %v120, 2
    %v126 = vxor.u32 %v116, 2147483648
    %v127 = vsel %vm125, %v126, %v117
    %v128 = vsel %vm121, %v124, %v127
    %v129 = vsel %vm118, nan, %v128
    %v130 = vand.u32 2147483647, %v25
    %vm131 = vcmp.le.f32.partialorder %v130, 0.7853982
    %vm132 = vcmp.lt.s32.totalorder %v25, 0
    %v133 = vand.u32 %v25, 2139095040
    %v134 = vshrl.u32 %v133, 23
    %v135 = vsub.s32 %v134, 127
    %v136 = vand.u32 2147483647, %v25
    %v137 = vand.u32 %v136, 8388607
    %v138 = vor.u32 %v137, 8388608
    %v139 = vsub.s32 0, %v138
    %v140 = vadd.s32 %v135, 1
    %vm141 = vcmp.gt.s32.totalorder %v140, 0
    %v142 = vsel %vm141, %v140, 0
    %v143 = vshrl.u32 %v142, 5
    %v144 = vand.u32 %v142, 31
    %v145 = vsub.s32 32, %v144
    %v146 = vshrl.u32 683565275, %v145
    %v147 = vshll.u32 683565275, %v144
    %v148 = vshrl.u32 2475754826, %v145
    %v149 = vor.u32 %v147, %v148
    %v150 = vshll.u32 2475754826, %v144
    %v151 = vshrl.u32 2131351028, %v145
    %v152 = vor.u32 %v150, %v151
    %v153 = vshll.u32 2131351028, %v144
    %v154 = vshrl.u32 2102212464, %v145
    %v155 = vor.u32 %v153, %v154
    %v156 = vshll.u32 2102212464, %v144
    %v157 = vshrl.u32 920167782, %v145
    %v158 = vor.u32 %v156, %v157
    %v159 = vshll.u32 920167782, %v144
    %v160 = vshrl.u32 1326507024, %v145
    %v161 = vor.u32 %v159, %v160
    %vm162 = vcmp.lt.s32.totalorder %v143, 1
    %vm163 = vcmp.lt.s32.totalorder %v143, 2
    %vm164 = vcmp.lt.s32.totalorder %v143, 3
    %vm165 = vcmp.lt.s32.totalorder %v143, 4
    %v166 = vsel %vm162, %v146, %v149
    %v167 = vsel %vm165, %v155, 2102212464
    %v168 = vsel %vm164, %v152, %v167
    %v169 = vsel %vm163, %v166, %v168
    %v170 = vsel %vm162, %v149, %v152
    %v171 = vsel %vm165, %v158, 920167782
    %v172 = vsel %vm164, %v155, %v171
    %v173 = vsel %vm163, %v170, %v172
    %v174 = vsel %vm162, %v152, %v155
    %v175 = vsel %vm165, %v161, 1326507024
    %v176 = vsel %vm164, %v158, %v175
    %v177 = vsel %vm163, %v174, %v176
    %v178 = vshll.u32 %v138, 8
    %v179 = vmul.u32.u64.compose %v178, %v177
    %v180 = vextract.low.u32 %v179
    %v181 = vextract.high.u32 %v179
    %v182 = vmul.u32.u64.compose %v178, %v173
    %v183 = vextract.low.u32 %v182
    %v184 = vextract.high.u32 %v182
    %v185 = vmul.u32 %v178, %v169
    %v186 = vadd.s32 %v181, %v183
    %vm187 = vc.u32 %v181, %v183
    %v188 = vadd.s32 %v184, 1
    %v189 = vsel %vm187, %v188, %v184
    %v190 = vadd.s32 %v185, %v189
    %v191 = vadd.s32 %v190, 536870912
    %v192 = vshrl.u32 %v191, 30
    %v193 = vshll.u32 %v192, 30
    %v194 = vsub.s32 %v190, %v193
    %vm195 = vcmp.lt.s32.totalorder %v194, 0
    %v196 = vsub.s32 0, %v194
    %v197 = vsel %vm195, %v196, %v194
    %v198 = vclz %v197
    %v199 = vsub.s32 %v198, 2
    %vm200 = vcmp.gt.s32.totalorder 0, %v199
    %v201 = vsel %vm200, 0, %v199
    %v202 = vsub.s32 32, %v201
    %v203 = vshll.u32 %v194, %v201
    %v204 = vshrl.u32 %v186, %v202
    %v205 = vor.u32 %v203, %v204
    %v206 = vsub.s32 4294967266, %v201
    %v207 = vadd.s32 %v206, 127
    %v208 = vshll.u32 %v207, 23
    %v209 = vor.u32 4788187, %v208
    %v210 = vand.u32 2147483647, %v209
    %v212 = vcvt.s32.f32 %v205
    %v213 = vmul.f32 %v212, %v210
    %v214 = vxor.u32 %v213, 2147483648
    %v215 = vsel %vm132, %v214, %v213
    %v216 = vsub.s32 4, %v192
    %v217 = vsel %vm132, %v216, %v192
    %v218 = vsel %vm131, %v25, %v215
    %v219 = vsel %vm131, 0, %v217
    %v220 = vcosq.f32.pop %v218
    %v221 = vsinq.f32.pop %v218
    %vm222 = vweird.f32 %v25
    %v223 = vand.u32 %v219, 3
    %vm224 = vcmp.lt.s32.totalorder %v223, 2
    %vm225 = vcmp.eq.s32.totalorder %v223, 0
    %v226 = vxor.u32 %v221, 2147483648
    %v227 = vsel %vm225, %v220, %v226
    %vm228 = vcmp.eq.s32.totalorder %v223, 2
    %v229 = vxor.u32 %v220, 2147483648
    %v230 = vsel %vm228, %v229, %v221
    %v231 = vsel %vm224, %v227, %v230
    %v232 = vsel %vm222, nan, %v231
    %v233 = vsel %vm12, 1, 0
    %vm234 = vcmp.eq.s32.totalorder %v233, 1
    %v235 = vsel %vm234, %v129, %v232
    %vm236 = vcmask 261120
    %237 = vst.msk [vmem:[#allocation2] sm:$0xff] %vm236, %v235
    // Predicated region
    $region6: #{tpu_custom_call.1} parent=1 // pred_check
      _
    $region7: #{tpu_custom_call.1} parent=1 // pred_check_branch
      %239 = sbr.rel (0) target = $region9
    $region8: #{tpu_custom_call.1} parent=1 // pred_region
      %s241 = ssub.s32 128, 128
      %242 = vsyncadd [#allocation3], %s241
      %s244 = sshll.u32 [#allocation2], 4
      %s245 = int_to_ptr.vmem [resolvable:$true] %s244
      %247 = dma.vmem_to_hbm [thread:$0]  %s245, 128, %s1, [#allocation3]
    $region9: #{tpu_custom_call.1} parent=1 // pred_fallthru
      _
    // Predicated region
    $region10: #{tpu_custom_call.1} parent=1 // pred_check
      _
    $region11: #{tpu_custom_call.1} parent=1 // pred_check_branch
      %249 = sbr.rel (0) target = $region13
    $region12: #{tpu_custom_call.1} parent=1 // pred_region
      %250 = dma.done [#allocation3], 128
    $region13: #{tpu_custom_call.1} parent=1 // pred_fallthru
      _
    %251 = vsyncpa [#allocation3], 1

</llo_original>
